<compile_context>
chip_gen: v6e
topology: v6e:2x2x1
jax: 0.10.0
libtpu: 0.0.40
codegen_flags: <defaults>
</compile_context>

<pallas_src>
import functools

import jax
import jax.numpy as jnp
from jax.experimental import pallas as pl
from jax.experimental.pallas import tpu as pltpu


def _round_up(x, m):
    return (x + m - 1) // m * m


# ----------------------------- Pallas kernel ------------------------------ #

def _make_cnn_kernel(b_pad, l_blk, c_pad):
    """conv(all branches, one matmul) + ReLU + masked max-pool + fc."""

    def kernel(x_ref, w_ref, mask_ref, fcw_ref, out_ref):
        # x_ref:    [b_pad*l_blk, k_pad]  bf16  lane-packed im2col (+1.0 bias lane)
        # w_ref:    [k_pad, c_pad]        bf16  packed conv weight (+bias row)
        # mask_ref: [l_blk, c_pad]        f32   {0,1} validity mask (constant)
        # fcw_ref:  [c_pad, cla_pad]      bf16  fc weight (+fc-bias row)
        # out_ref:  [b_pad, cla_pad]      f32
        h = jnp.dot(x_ref[...], w_ref[...], preferred_element_type=jnp.float32)
        h = jnp.maximum(h, 0.0)                   # conv bias already in the matmul
        # Per-branch L_out / padding mask: valid values are >= 0 after ReLU,
        # so a masked 0 never wins the max.  8-aligned reshape, no relayout.
        h = h.reshape(b_pad, l_blk, c_pad) * mask_ref[...]
        pooled = jnp.max(h, axis=1)               # max_pool1d -> [b_pad, c_pad]
        # Final fc; the always-1 pooled channel adds the fc bias.
        out_ref[...] = jnp.dot(pooled.astype(fcw_ref.dtype), fcw_ref[...],
                               preferred_element_type=jnp.float32)

    return kernel


# ------------------------------ JAX wrapper -------------------------------- #

def cnn_forward(tokens, pos, params, *, kernel_sizes, sent_len, knum, cla):
    """Full CNNModel.forward (dropout = identity)."""
    embed_w = params["embed_w"]          # [Vocab, Dim]
    pos_embed_w = params["pos_embed_w"]  # [2*sent_len, Pos_dim]
    conv_ws = params["conv_ws"]          # list of [Knum, 1, K, D]  (PyTorch layout)
    conv_bs = params["conv_bs"]          # list of [Knum]
    fc_w = params["fc_w"]                # [Cla, len(Ks)*Knum]      (PyTorch layout)
    fc_b = params["fc_b"]                # [Cla]

    # ---- glue: embedding lookups + position embedding + concat ----
    x = jnp.take(embed_w, tokens, axis=0)                       # [B, L, Dim]
    p = jnp.take(pos_embed_w, pos + sent_len - 1, axis=0)       # [B, 2L, Pos_dim]
    p = p.reshape(p.shape[0], p.shape[1] // 2, -1)              # [B, L, 2*Pos_dim]
    feat = jnp.concatenate([x, p], axis=2).astype(jnp.float32)  # [B, L, D]
    B, L, D = feat.shape

    pads = [(K - 1) // 2 for K in kernel_sizes]
    l_outs = [L + 2 * pad - K + 1 for K, pad in zip(kernel_sizes, pads)]
    max_pad = max(pads)
    num_shifts = max(max_pad - pad + K for K, pad in zip(kernel_sizes, pads))

    c = len(kernel_sizes) * knum
    bias_lane = c                                  # spare channel carries fc bias
    c_pad = _round_up(c + 1, 128)                  # lane-dense fused channel dim
    cla_pad = _round_up(cla, 128)                  # lane-dense output
    l_blk = _round_up(L + 2 * max_pad, 8)          # per-batch row block (8-aligned)
    b_pad = _round_up(B, 8)                        # unmasked output sublanes
    rows = b_pad * l_blk
    k_cols = num_shifts * D
    k_pad = _round_up(k_cols + 1, 128)             # +1 conv-bias lane

    # Static safety checks (mask rows / windows must fit the per-batch block).
    assert max(l_outs) <= l_blk and max_pad + L <= l_blk
    assert k_cols < k_pad and bias_lane < c_pad

    # ---- lane-packed im2col (per-batch trailing zeros: the widest window
    #      never reads another batch's data) ----
    feat_ext = jnp.zeros((b_pad, l_blk + num_shifts, D), jnp.float32)
    feat_ext = feat_ext.at[:B, max_pad:max_pad + L, :].set(feat)
    im2col = jnp.concatenate(
        [feat_ext[:, s:s + l_blk, :] for s in range(num_shifts)], axis=2)
    x_pack = jnp.zeros((b_pad, l_blk, k_pad), jnp.float32)
    x_pack = x_pack.at[:, :, :k_cols].set(im2col)
    x_pack = x_pack.at[:, :, k_cols].set(1.0)            # conv-bias lane
    x_pack = x_pack.reshape(rows, k_pad).astype(jnp.bfloat16)

    # ---- packed conv weight / validity mask / fc weight (constants) ----
    wpack = jnp.zeros((num_shifts, D, c_pad), jnp.float32)
    brow = jnp.zeros((c_pad,), jnp.float32)
    mask = jnp.zeros((l_blk, c_pad), jnp.float32)
    for i, (K, pad) in enumerate(zip(kernel_sizes, pads)):
        w = conv_ws[i].reshape(knum, K, D).transpose(1, 2, 0)    # [K, D, Knum]
        s0 = max_pad - pad
        wpack = wpack.at[s0:s0 + K, :, i * knum:(i + 1) * knum].set(w)
        brow = brow.at[i * knum:(i + 1) * knum].set(conv_bs[i])
        mask = mask.at[:l_outs[i], i * knum:(i + 1) * knum].set(1.0)
    brow = brow.at[bias_lane].set(1.0)                   # pooled bias channel == 1
    mask = mask.at[:, bias_lane].set(1.0)
    wfull = jnp.zeros((k_pad, c_pad), jnp.float32)
    wfull = wfull.at[:k_cols, :].set(wpack.reshape(k_cols, c_pad))
    wfull = wfull.at[k_cols, :].set(brow)
    wfull = wfull.astype(jnp.bfloat16)

    fcw_pack = jnp.zeros((c_pad, cla_pad), jnp.float32)
    fcw_pack = fcw_pack.at[:c, :cla].set(fc_w.T)
    fcw_pack = fcw_pack.at[bias_lane, :cla].set(fc_b)    # fc bias row
    fcw_pack = fcw_pack.astype(jnp.bfloat16)

    # ---- hot path: single fused Pallas kernel (gridless, 4 operands) ----
    kernel = _make_cnn_kernel(b_pad, l_blk, c_pad)
    vmem = lambda: pl.BlockSpec(memory_space=pltpu.MemorySpace.VMEM)
    out = pl.pallas_call(
        kernel,
        out_shape=jax.ShapeDtypeStruct((b_pad, cla_pad), jnp.float32),
        in_specs=[vmem() for _ in range(4)],
        out_specs=vmem(),
    )(x_pack, wfull, mask, fcw_pack)
    return out[:B, :cla]


# ------------------------ pure-JAX reference (check) ----------------------- #

def cnn_forward_ref(tokens, pos, params, *, kernel_sizes, sent_len, knum, cla):
    x = jnp.take(params["embed_w"], tokens, axis=0)
    p = jnp.take(params["pos_embed_w"], pos + sent_len - 1, axis=0)
    p = p.reshape(p.shape[0], p.shape[1] // 2, -1)
    feat = jnp.concatenate([x, p], axis=2)
    B, L, D = feat.shape
    feats = []
    for K, w4, b in zip(kernel_sizes, params["conv_ws"], params["conv_bs"]):
        pad = (K - 1) // 2
        xp = jnp.pad(feat, ((0, 0), (pad, pad), (0, 0)))
        L_out = L + 2 * pad - K + 1
        w2 = w4.reshape(knum, K * D)                     # [Knum, K*D]
        rows = []
        for t in range(L_out):
            win = xp[:, t:t + K, :].reshape(B, K * D)
            rows.append(win @ w2.T + b)                  # [B, Knum]
        h = jax.nn.relu(jnp.stack(rows, axis=1))         # [B, L_out, Knum]
        feats.append(jnp.max(h, axis=1))
    cat = jnp.concatenate(feats, axis=1)                 # [B, len(Ks)*Knum]
    return cat @ params["fc_w"].T + params["fc_b"]


# ---------------------------------- main ----------------------------------- #

if __name__ == "__main__":
    # Small config consistent with the module's __init__ / forward.
    VOCAB = 50
    EMBED_DIM = 32
    POS_DIM = 8
    SENT_LEN = 8
    KERNEL_NUM = 16
    KERNEL_SIZES = (3, 4, 5)
    CLASS_NUM = 4
    BATCH = 2
    D_TOTAL = EMBED_DIM + 2 * POS_DIM

    key = jax.random.PRNGKey(0)
    keys = jax.random.split(key, 4 + 2 * len(KERNEL_SIZES))

    # Deterministic synthetic parameters (module __init__ shapes, PyTorch layouts).
    embed_w = 0.1 * jax.random.normal(keys[0], (VOCAB, EMBED_DIM), jnp.float32)
    pos_embed_w = 0.1 * jax.random.normal(keys[1], (2 * SENT_LEN, POS_DIM), jnp.float32)
    conv_ws, conv_bs = [], []
    for i, K in enumerate(KERNEL_SIZES):
        w4 = 0.05 * jax.random.normal(keys[2 + 2 * i], (KERNEL_NUM, 1, K, D_TOTAL), jnp.float32)
        b = 0.01 * jax.random.normal(keys[3 + 2 * i], (KERNEL_NUM,), jnp.float32)
        conv_ws.append(w4)
        conv_bs.append(b)
    fc_w = 0.1 * jax.random.normal(keys[-2], (CLASS_NUM, len(KERNEL_SIZES) * KERNEL_NUM), jnp.float32)
    fc_b = 0.01 * jax.random.normal(keys[-1], (CLASS_NUM,), jnp.float32)

    params = dict(embed_w=embed_w, pos_embed_w=pos_embed_w,
                  conv_ws=conv_ws, conv_bs=conv_bs, fc_w=fc_w, fc_b=fc_b)

    # Deterministic example inputs: cx = (token ids, relative position ids).
    k_tok, k_pos = jax.random.split(jax.random.PRNGKey(0), 2)
    tokens = jax.random.randint(k_tok, (BATCH, SENT_LEN), 0, VOCAB, dtype=jnp.int32)
    # pos has 2*sent_len entries per example; pos + sent_len - 1 must index [0, 2*sent_len).
    pos = jax.random.randint(k_pos, (BATCH, 2 * SENT_LEN),
                             1 - SENT_LEN, SENT_LEN + 1, dtype=jnp.int32)

    fwd = functools.partial(
        cnn_forward, kernel_sizes=KERNEL_SIZES, sent_len=SENT_LEN,
        knum=KERNEL_NUM, cla=CLASS_NUM,
    )
    logits = jax.jit(lambda t, p: fwd(t, p, params))(tokens, pos)
    logits = jax.block_until_ready(logits)

    ref = cnn_forward_ref(tokens, pos, params, kernel_sizes=KERNEL_SIZES,
                          sent_len=SENT_LEN, knum=KERNEL_NUM, cla=CLASS_NUM)
    # Tolerance loosened vs the f32 reference because MXU operands are bf16.
    if not jnp.allclose(logits, ref, atol=2e-2, rtol=2e-2):
        raise AssertionError("Pallas kernel output mismatch vs pure-JAX reference")

    print("KERNEL_OK")
</pallas_src>

<mosaic_0001>
module attributes {stable_mosaic.version = 11 : i64} {
  func.func @kernel(%arg0: memref<128x256xbf16, #tpu.memory_space<vmem>>, %arg1: memref<256x128xbf16, #tpu.memory_space<vmem>>, %arg2: memref<16x128xf32, #tpu.memory_space<vmem>>, %arg3: memref<128x128xbf16, #tpu.memory_space<vmem>>, %arg4: memref<8x128xf32, #tpu.memory_space<vmem>>) attributes {dimension_semantics = [], scalar_prefetch = 0 : i64, scratch_operands = 0 : i64, tpu.core_type = #tpu.core_type<tc>} {
    %c0 = arith.constant 0 : index
    %c0_0 = arith.constant 0 : index
    %0 = vector.load %arg0[%c0, %c0_0] : memref<128x256xbf16, #tpu.memory_space<vmem>>, vector<128x256xbf16>
    %c0_1 = arith.constant 0 : index
    %c0_2 = arith.constant 0 : index
    %1 = vector.load %arg1[%c0_1, %c0_2] : memref<256x128xbf16, #tpu.memory_space<vmem>>, vector<256x128xbf16>
    %cst = arith.constant dense<0.000000e+00> : vector<128x128xf32>
    %2 = tpu.matmul %0, %1, %cst {dimension_numbers = #tpu.dot_dimension_numbers<[1], [0], [0], [1], [0, 0, 1, 1], [], []>} : vector<128x256xbf16>, vector<256x128xbf16>, vector<128x128xf32> -> vector<128x128xf32>
    %cst_3 = arith.constant 0.000000e+00 : f32
    %3 = vector.broadcast %cst_3 : f32 to vector<128x128xf32>
    %4 = arith.maximumf %2, %3 : vector<128x128xf32>
    %5 = vector.shape_cast %4 : vector<128x128xf32> to vector<8x16x128xf32>
    %c0_4 = arith.constant 0 : index
    %c0_5 = arith.constant 0 : index
    %6 = vector.load %arg2[%c0_4, %c0_5] : memref<16x128xf32, #tpu.memory_space<vmem>>, vector<16x128xf32>
    %7 = vector.shape_cast %6 : vector<16x128xf32> to vector<1x16x128xf32>
    %8 = vector.broadcast %7 : vector<1x16x128xf32> to vector<8x16x128xf32>
    %9 = arith.mulf %5, %8 : vector<8x16x128xf32>
    %cst_6 = arith.constant dense<0xFF800000> : vector<8x128xf32>
    %10 = vector.multi_reduction <maximumf>, %9, %cst_6 [1] : vector<8x16x128xf32> to vector<8x128xf32>
    %11 = arith.truncf %10 : vector<8x128xf32> to vector<8x128xbf16>
    %c0_7 = arith.constant 0 : index
    %c0_8 = arith.constant 0 : index
    %12 = vector.load %arg3[%c0_7, %c0_8] : memref<128x128xbf16, #tpu.memory_space<vmem>>, vector<128x128xbf16>
    %cst_9 = arith.constant dense<0.000000e+00> : vector<8x128xf32>
    %13 = tpu.matmul %11, %12, %cst_9 {dimension_numbers = #tpu.dot_dimension_numbers<[1], [0], [0], [1], [0, 0, 1, 1], [], []>} : vector<8x128xbf16>, vector<128x128xbf16>, vector<8x128xf32> -> vector<8x128xf32>
    %c0_10 = arith.constant 0 : index
    %c0_11 = arith.constant 0 : index
    %14 = vector.load %arg4[%c0_10, %c0_11] : memref<8x128xf32, #tpu.memory_space<vmem>>, vector<8x128xf32>
    tpu.vector_store %arg4[%c0_10, %c0_11], %13 {strides = array<i32>} : memref<8x128xf32, #tpu.memory_space<vmem>>, vector<8x128xf32>,
    return
  }
}

</mosaic_0001>

<llo_original>
// kernel: _lambda_.1
$region0: #{_lambda_.1}
  #allocation0 [shape = 'u32[]', space=smem, size = 0x4, offset = 0x4, fixed_abs, tag = 'smem constant byte address 0x4 - core index']
  #allocation1 [shape = 'u32[144,128]{1,0:T(1,128)}', space=vmem, size = 0x12000, scoped, tag = 'internal scratch']
  %s0 = inlined_call_operand.vmem [shape: bf16[128,256], index: 0, kind: input, shape index: {}]
  %s1 = inlined_call_operand.vmem [shape: bf16[256,128], index: 1, kind: input, shape index: {}]
  %s2 = inlined_call_operand.vmem [shape: f32[16,128], index: 2, kind: input, shape index: {}]
  %s3 = inlined_call_operand.vmem [shape: bf16[128,128], index: 3, kind: input, shape index: {}]
  %s4 = inlined_call_operand.vmem [shape: f32[8,128], index: 4, kind: output, shape index: {}]
  %s5 = sld [smem:[#allocation0]]
  $region26: #{_lambda_.1} parent=0
    _
  %s7 = ssub.s32 1, %s5
  %s8 = scalar_select 0, %s7, %s5
  // Predicated region
  $region2: #{_lambda_.1} parent=0 // pred_check
    _
  $region3: #{_lambda_.1} parent=0 // pred_check_branch
    %10 = sbr.rel (0) target = $region5
  $region4: #{_lambda_.1} parent=0 // pred_region
    _
  $region5: #{_lambda_.1} parent=0 // pred_fallthru
    _
  // Predicated region
  $region6: #{_lambda_.1} parent=0 // pred_check
    _
  $region7: #{_lambda_.1} parent=0 // pred_check_branch
    %12 = sbr.rel (0) target = $region9
  $region8: #{_lambda_.1} parent=0 // pred_region
    _
  $region9: #{_lambda_.1} parent=0 // pred_fallthru
    _
  // Predicated region
  $region10: #{_lambda_.1} parent=0 // pred_check
    _
  $region11: #{_lambda_.1} parent=0 // pred_check_branch
    %14 = sbr.rel (0) target = $region13
  $region12: #{_lambda_.1} parent=0 // pred_region
    _
  $region13: #{_lambda_.1} parent=0 // pred_fallthru
    _
  // Predicated region
  $region14: #{_lambda_.1} parent=0 // pred_check
    _
  $region15: #{_lambda_.1} parent=0 // pred_check_branch
    %16 = sbr.rel (0) target = $region17
  $region16: #{_lambda_.1} parent=0 // pred_region
    _
  $region17: #{_lambda_.1} parent=0 // pred_fallthru
    _
  %v18 = vld [vmem:[%s0] sm:$0xff]
  %v19 = vld [vmem:[%s0 + $0x8] sm:$0xff]
  %v20 = vld [vmem:[%s0 + $0x10] sm:$0xff]
  %v21 = vld [vmem:[%s0 + $0x18] sm:$0xff]
  %v22 = vld [vmem:[%s0 + $0x20] sm:$0xff]
  %v23 = vld [vmem:[%s0 + $0x28] sm:$0xff]
  %v24 = vld [vmem:[%s0 + $0x30] sm:$0xff]
  %v25 = vld [vmem:[%s0 + $0x38] sm:$0xff]
  %v26 = vld [vmem:[%s0 + $0x40] sm:$0xff]
  %v27 = vld [vmem:[%s0 + $0x48] sm:$0xff]
  %v28 = vld [vmem:[%s0 + $0x50] sm:$0xff]
  %v29 = vld [vmem:[%s0 + $0x58] sm:$0xff]
  %v30 = vld [vmem:[%s0 + $0x60] sm:$0xff]
  %v31 = vld [vmem:[%s0 + $0x68] sm:$0xff]
  %v32 = vld [vmem:[%s0 + $0x70] sm:$0xff]
  %v33 = vld [vmem:[%s0 + $0x78] sm:$0xff]
  %v34 = vld [vmem:[%s1] sm:$0xf]
  %v35 = vld [vmem:[%s1 + $0x4] sm:$0xf]
  %v36 = vld [vmem:[%s1 + $0x8] sm:$0xf]
  %v37 = vld [vmem:[%s1 + $0xc] sm:$0xf]
  %v38 = vld [vmem:[%s1 + $0x10] sm:$0xf]
  %v39 = vld [vmem:[%s1 + $0x14] sm:$0xf]
  %v40 = vld [vmem:[%s1 + $0x18] sm:$0xf]
  %v41 = vld [vmem:[%s1 + $0x1c] sm:$0xf]
  %v42 = vld [vmem:[%s1 + $0x20] sm:$0xf]
  %v43 = vld [vmem:[%s1 + $0x24] sm:$0xf]
  %v44 = vld [vmem:[%s1 + $0x28] sm:$0xf]
  %v45 = vld [vmem:[%s1 + $0x2c] sm:$0xf]
  %v46 = vld [vmem:[%s1 + $0x30] sm:$0xf]
  %v47 = vld [vmem:[%s1 + $0x34] sm:$0xf]
  %v48 = vld [vmem:[%s1 + $0x38] sm:$0xf]
  %v49 = vld [vmem:[%s1 + $0x3c] sm:$0xf]
  %v50 = vld [vmem:[%s1 + $0x40] sm:$0xf]
  %v51 = vld [vmem:[%s1 + $0x44] sm:$0xf]
  %v52 = vld [vmem:[%s1 + $0x48] sm:$0xf]
  %v53 = vld [vmem:[%s1 + $0x4c] sm:$0xf]
  %v54 = vld [vmem:[%s1 + $0x50] sm:$0xf]
  %v55 = vld [vmem:[%s1 + $0x54] sm:$0xf]
  %v56 = vld [vmem:[%s1 + $0x58] sm:$0xf]
  %v57 = vld [vmem:[%s1 + $0x5c] sm:$0xf]
  %v58 = vld [vmem:[%s1 + $0x60] sm:$0xf]
  %v59 = vld [vmem:[%s1 + $0x64] sm:$0xf]
  %v60 = vld [vmem:[%s1 + $0x68] sm:$0xf]
  %v61 = vld [vmem:[%s1 + $0x6c] sm:$0xf]
  %v62 = vld [vmem:[%s1 + $0x70] sm:$0xf]
  %v63 = vld [vmem:[%s1 + $0x74] sm:$0xf]
  %v64 = vld [vmem:[%s1 + $0x78] sm:$0xf]
  %v65 = vld [vmem:[%s1 + $0x7c] sm:$0xf]
  %v82 = vunpack.c.l.b16 %v18
  %v83 = vunpack.c.h.b16 %v18
  %v84 = vunpack.c.l.b16 %v19
  %v85 = vunpack.c.h.b16 %v19
  %v86 = vunpack.c.l.b16 %v20
  %v87 = vunpack.c.h.b16 %v20
  %v88 = vunpack.c.l.b16 %v21
  %v89 = vunpack.c.h.b16 %v21
  %v90 = vunpack.c.l.b16 %v22
  %v91 = vunpack.c.h.b16 %v22
  %v92 = vunpack.c.l.b16 %v23
  %v93 = vunpack.c.h.b16 %v23
  %v94 = vunpack.c.l.b16 %v24
  %v95 = vunpack.c.h.b16 %v24
  %v96 = vunpack.c.l.b16 %v25
  %v97 = vunpack.c.h.b16 %v25
  %v98 = vunpack.c.l.b16 %v26
  %v99 = vunpack.c.h.b16 %v26
  %v100 = vunpack.c.l.b16 %v27
  %v101 = vunpack.c.h.b16 %v27
  %v102 = vunpack.c.l.b16 %v28
  %v103 = vunpack.c.h.b16 %v28
  %v104 = vunpack.c.l.b16 %v29
  %v105 = vunpack.c.h.b16 %v29
  %v106 = vunpack.c.l.b16 %v30
  %v107 = vunpack.c.h.b16 %v30
  %v108 = vunpack.c.l.b16 %v31
  %v109 = vunpack.c.h.b16 %v31
  %v110 = vunpack.c.l.b16 %v32
  %v111 = vunpack.c.h.b16 %v32
  %v112 = vunpack.c.l.b16 %v33
  %v113 = vunpack.c.h.b16 %v33
  %v114 = vpack.c.b16 %v84, %v82
  %v115 = vpack.c.b16 %v85, %v83
  %v116 = vpack.c.b16 %v88, %v86
  %v117 = vpack.c.b16 %v89, %v87
  %v118 = vpack.c.b16 %v92, %v90
  %v119 = vpack.c.b16 %v93, %v91
  %v120 = vpack.c.b16 %v96, %v94
  %v121 = vpack.c.b16 %v97, %v95
  %v122 = vpack.c.b16 %v100, %v98
  %v123 = vpack.c.b16 %v101, %v99
  %v124 = vpack.c.b16 %v104, %v102
  %v125 = vpack.c.b16 %v105, %v103
  %v126 = vpack.c.b16 %v108, %v106
  %v127 = vpack.c.b16 %v109, %v107
  %v128 = vpack.c.b16 %v112, %v110
  %v129 = vpack.c.b16 %v113, %v111
  %v178 = vunpack.c.l.b16 %v34
  %v179 = vunpack.c.l.b16 %v35
  %v180 = vunpack.c.l.b16 %v36
  %v181 = vunpack.c.l.b16 %v37
  %v182 = vunpack.c.l.b16 %v38
  %v183 = vunpack.c.l.b16 %v39
  %v184 = vunpack.c.l.b16 %v40
  %v185 = vunpack.c.l.b16 %v41
  %v186 = vunpack.c.l.b16 %v42
  %v187 = vunpack.c.l.b16 %v43
  %v188 = vunpack.c.l.b16 %v44
  %v189 = vunpack.c.l.b16 %v45
  %v190 = vunpack.c.l.b16 %v46
  %v191 = vunpack.c.l.b16 %v47
  %v192 = vunpack.c.l.b16 %v48
  %v193 = vunpack.c.l.b16 %v49
  %v194 = vunpack.c.l.b16 %v50
  %v195 = vunpack.c.l.b16 %v51
  %v196 = vunpack.c.l.b16 %v52
  %v197 = vunpack.c.l.b16 %v53
  %v198 = vunpack.c.l.b16 %v54
  %v199 = vunpack.c.l.b16 %v55
  %v200 = vunpack.c.l.b16 %v56
  %v201 = vunpack.c.l.b16 %v57
  %v202 = vunpack.c.l.b16 %v58
  %v203 = vunpack.c.l.b16 %v59
  %v204 = vunpack.c.l.b16 %v60
  %v205 = vunpack.c.l.b16 %v61
  %v206 = vunpack.c.l.b16 %v62
  %v207 = vunpack.c.l.b16 %v63
  %v208 = vunpack.c.l.b16 %v64
  %v209 = vunpack.c.l.b16 %v65
  %v210 = vpack.c.b16 %v179, %v178
  %v211 = vpack.c.b16 %v181, %v180
  %v212 = vpack.c.b16 %v183, %v182
  %v213 = vpack.c.b16 %v185, %v184
  %v214 = vpack.c.b16 %v187, %v186
  %v215 = vpack.c.b16 %v189, %v188
  %v216 = vpack.c.b16 %v191, %v190
  %v217 = vpack.c.b16 %v193, %v192
  %v218 = vpack.c.b16 %v195, %v194
  %v219 = vpack.c.b16 %v197, %v196
  %v220 = vpack.c.b16 %v199, %v198
  %v221 = vpack.c.b16 %v201, %v200
  %v222 = vpack.c.b16 %v203, %v202
  %v223 = vpack.c.b16 %v205, %v204
  %v224 = vpack.c.b16 %v207, %v206
  %v225 = vpack.c.b16 %v209, %v208
  %242 = vmatprep.subr.bf16.mxu0 0
  %243 = vmatpush1.bf16.msra.mxu0 %v217
  %244 = vmatprep.subr.bf16.mxu0 0
  %245 = vmatpush1.bf16.msra.mxu0 %v216
  %246 = vmatprep.subr.bf16.mxu0 0
  %247 = vmatpush1.bf16.msra.mxu0 %v215
  %248 = vmatprep.subr.bf16.mxu0 0
  %249 = vmatpush1.bf16.msra.mxu0 %v214
  %250 = vmatprep.subr.bf16.mxu0 0
  %251 = vmatpush1.bf16.msra.mxu0 %v213
  %252 = vmatprep.subr.bf16.mxu0 0
  %253 = vmatpush1.bf16.msra.mxu0 %v212
  %254 = vmatprep.subr.bf16.mxu0 0
  %255 = vmatpush1.bf16.msra.mxu0 %v211
  %256 = vmatprep.subr.bf16.mxu0 0
  %257 = vmatpush1.bf16.msra.mxu0 %v210
  %258 = vmatprep.subr.bf16.mxu0 0
  %259 = vmatpush2.bf16.msra.mxu0 %v225
  %260 = vmatprep.subr.bf16.mxu0 0
  %261 = vmatpush2.bf16.msra.mxu0 %v224
  %262 = vmatprep.subr.bf16.mxu0 0
  %263 = vmatpush2.bf16.msra.mxu0 %v223
  %264 = vmatprep.subr.bf16.mxu0 0
  %265 = vmatpush2.bf16.msra.mxu0 %v222
  %266 = vmatprep.subr.bf16.mxu0 0
  %267 = vmatpush2.bf16.msra.mxu0 %v221
  %268 = vmatprep.subr.bf16.mxu0 0
  %269 = vmatpush2.bf16.msra.mxu0 %v220
  %270 = vmatprep.subr.bf16.mxu0 0
  %271 = vmatpush2.bf16.msra.mxu0 %v219
  %272 = vmatprep.subr.bf16.mxu0 0
  %273 = vmatpush2.bf16.msra.mxu0 %v218
  %274 = vmatprep.mubr.bf16.mxu0 %v115
  %275 = vmatmul.mubr.bf16.gmra.mxu0 %v114
  %v276 = vpop.f32.mrf.mxu0
  %v277 = vadd.f32 0.0, %v276
  %v278 = vpop.f32.mrf.mxu0
  %v279 = vpop.f32.mrf.mxu0
  %v280 = vadd.f32 0.0, %v279
  %v281 = vpop.f32.mrf.mxu0
  %282 = vmatprep.mubr.bf16.mxu0 %v117
  %283 = vmatmul.mubr.bf16.gmra.mxu0 %v116
  %v284 = vpop.f32.mrf.mxu0
  %v285 = vadd.f32 0.0, %v284
  %v286 = vpop.f32.mrf.mxu0
  %v287 = vpop.f32.mrf.mxu0
  %v288 = vadd.f32 0.0, %v287
  %v289 = vpop.f32.mrf.mxu0
  %290 = vmatprep.mubr.bf16.mxu0 %v119
  %291 = vmatmul.mubr.bf16.gmra.mxu0 %v118
  %v292 = vpop.f32.mrf.mxu0
  %v293 = vadd.f32 0.0, %v292
  %v294 = vpop.f32.mrf.mxu0
  %v295 = vpop.f32.mrf.mxu0
  %v296 = vadd.f32 0.0, %v295
  %v297 = vpop.f32.mrf.mxu0
  %298 = vmatprep.mubr.bf16.mxu0 %v121
  %299 = vmatmul.mubr.bf16.gmra.mxu0 %v120
  %v300 = vpop.f32.mrf.mxu0
  %v301 = vadd.f32 0.0, %v300
  %v302 = vpop.f32.mrf.mxu0
  %v303 = vpop.f32.mrf.mxu0
  %v304 = vadd.f32 0.0, %v303
  %v305 = vpop.f32.mrf.mxu0
  %306 = vmatprep.mubr.bf16.mxu0 %v123
  %307 = vmatmul.mubr.bf16.gmra.mxu0 %v122
  %v308 = vpop.f32.mrf.mxu0
  %v309 = vadd.f32 0.0, %v308
  %v310 = vpop.f32.mrf.mxu0
  %v311 = vpop.f32.mrf.mxu0
  %v312 = vadd.f32 0.0, %v311
  %v313 = vpop.f32.mrf.mxu0
  %314 = vmatprep.mubr.bf16.mxu0 %v125
  %315 = vmatmul.mubr.bf16.gmra.mxu0 %v124
  %v316 = vpop.f32.mrf.mxu0
  %v317 = vadd.f32 0.0, %v316
  %v318 = vpop.f32.mrf.mxu0
  %v319 = vpop.f32.mrf.mxu0
  %v320 = vadd.f32 0.0, %v319
  %v321 = vpop.f32.mrf.mxu0
  %322 = vmatprep.mubr.bf16.mxu0 %v127
  %323 = vmatmul.mubr.bf16.gmra.mxu0 %v126
  %v324 = vpop.f32.mrf.mxu0
  %v325 = vadd.f32 0.0, %v324
  %v326 = vpop.f32.mrf.mxu0
  %v327 = vpop.f32.mrf.mxu0
  %v328 = vadd.f32 0.0, %v327
  %v329 = vpop.f32.mrf.mxu0
  %330 = vmatprep.mubr.bf16.mxu0 %v129
  %331 = vmatmul.mubr.bf16.gmra.mxu0 %v128
  %v332 = vpop.f32.mrf.mxu0
  %v333 = vadd.f32 0.0, %v332
  %v334 = vpop.f32.mrf.mxu0
  %v335 = vpop.f32.mrf.mxu0
  %v336 = vadd.f32 0.0, %v335
  %v337 = vpop.f32.mrf.mxu0
  %338 = vdwg.mxu0
  %v339 = vmax.f32 %v277, 0.0
  %v340 = vmax.f32 %v280, 0.0
  %v341 = vmax.f32 %v285, 0.0
  %v342 = vmax.f32 %v288, 0.0
  %v343 = vmax.f32 %v293, 0.0
  %v344 = vmax.f32 %v296, 0.0
  %v345 = vmax.f32 %v301, 0.0
  %v346 = vmax.f32 %v304, 0.0
  %v347 = vmax.f32 %v309, 0.0
  %v348 = vmax.f32 %v312, 0.0
  %v349 = vmax.f32 %v317, 0.0
  %v350 = vmax.f32 %v320, 0.0
  %v351 = vmax.f32 %v325, 0.0
  %v352 = vmax.f32 %v328, 0.0
  %v353 = vmax.f32 %v333, 0.0
  %v354 = vmax.f32 %v336, 0.0
  %v355 = vld [vmem:[%s2] sm:$0xff]
  %v356 = vld [vmem:[%s2 + $0x8] sm:$0xff]
  %v357 = vmul.f32 %v339, %v355
  %v358 = vmul.f32 %v340, %v356
  %v359 = vmul.f32 %v341, %v355
  %v360 = vmul.f32 %v342, %v356
  %v361 = vmul.f32 %v343, %v355
  %v362 = vmul.f32 %v344, %v356
  %v363 = vmul.f32 %v345, %v355
  %v364 = vmul.f32 %v346, %v356
  %v365 = vmul.f32 %v347, %v355
  %v366 = vmul.f32 %v348, %v356
  %v367 = vmul.f32 %v349, %v355
  %v368 = vmul.f32 %v350, %v356
  %v369 = vmul.f32 %v351, %v355
  %v370 = vmul.f32 %v352, %v356
  %v371 = vmul.f32 %v353, %v355
  %v372 = vmul.f32 %v354, %v356
  %v373 = vmax.f32 %v357, %v358
  %v374 = vrot.slane %v373, 4
  %v375 = vmax.f32 %v373, %v374
  %v376 = vrot.slane %v375, 2
  %v377 = vmax.f32 %v375, %v376
  %v378 = vrot.slane %v377, 1
  %v379 = vmax.f32 %v377, %v378
  %v380 = vmax.f32 %v359, %v360
  %v381 = vrot.slane %v380, 4
  %v382 = vmax.f32 %v380, %v381
  %v383 = vrot.slane %v382, 2
  %v384 = vmax.f32 %v382, %v383
  %v385 = vrot.slane %v384, 1
  %v386 = vmax.f32 %v384, %v385
  %v387 = vmax.f32 %v361, %v362
  %v388 = vrot.slane %v387, 4
  %v389 = vmax.f32 %v387, %v388
  %v390 = vrot.slane %v389, 2
  %v391 = vmax.f32 %v389, %v390
  %v392 = vrot.slane %v391, 1
  %v393 = vmax.f32 %v391, %v392
  %v394 = vmax.f32 %v363, %v364
  %v395 = vrot.slane %v394, 4
  %v396 = vmax.f32 %v394, %v395
  %v397 = vrot.slane %v396, 2
  %v398 = vmax.f32 %v396, %v397
  %v399 = vrot.slane %v398, 1
  %v400 = vmax.f32 %v398, %v399
  %v401 = vmax.f32 %v365, %v366
  %v402 = vrot.slane %v401, 4
  %v403 = vmax.f32 %v401, %v402
  %v404 = vrot.slane %v403, 2
  %v405 = vmax.f32 %v403, %v404
  %v406 = vrot.slane %v405, 1
  %v407 = vmax.f32 %v405, %v406
  %v408 = vmax.f32 %v367, %v368
  %v409 = vrot.slane %v408, 4
  %v410 = vmax.f32 %v408, %v409
  %v411 = vrot.slane %v410, 2
  %v412 = vmax.f32 %v410, %v411
  %v413 = vrot.slane %v412, 1
  %v414 = vmax.f32 %v412, %v413
  %v415 = vmax.f32 %v369, %v370
  %v416 = vrot.slane %v415, 4
  %v417 = vmax.f32 %v415, %v416
  %v418 = vrot.slane %v417, 2
  %v419 = vmax.f32 %v417, %v418
  %v420 = vrot.slane %v419, 1
  %v421 = vmax.f32 %v419, %v420
  %v422 = vmax.f32 %v371, %v372
  %v423 = vrot.slane %v422, 4
  %v424 = vmax.f32 %v422, %v423
  %v425 = vrot.slane %v424, 2
  %v426 = vmax.f32 %v424, %v425
  %v427 = vrot.slane %v426, 1
  %v428 = vmax.f32 %v426, %v427
  %v429 = vpack.c.bf16 %v379, %v379
  %v430 = vpack.c.bf16 %v386, %v386
  %v431 = vpack.c.bf16 %v393, %v393
  %v432 = vpack.c.bf16 %v400, %v400
  %v433 = vpack.c.bf16 %v407, %v407
  %v434 = vpack.c.bf16 %v414, %v414
  %v435 = vpack.c.bf16 %v421, %v421
  %v436 = vpack.c.bf16 %v428, %v428
  %v437 = vld [vmem:[%s3] sm:$0xf]
  %v438 = vld [vmem:[%s3 + $0x4] sm:$0xf]
  %v439 = vld [vmem:[%s3 + $0x8] sm:$0xf]
  %v440 = vld [vmem:[%s3 + $0xc] sm:$0xf]
  %v441 = vld [vmem:[%s3 + $0x10] sm:$0xf]
  %v442 = vld [vmem:[%s3 + $0x14] sm:$0xf]
  %v443 = vld [vmem:[%s3 + $0x18] sm:$0xf]
  %v444 = vld [vmem:[%s3 + $0x1c] sm:$0xf]
  %v445 = vld [vmem:[%s3 + $0x20] sm:$0xf]
  %v446 = vld [vmem:[%s3 + $0x24] sm:$0xf]
  %v447 = vld [vmem:[%s3 + $0x28] sm:$0xf]
  %v448 = vld [vmem:[%s3 + $0x2c] sm:$0xf]
  %v449 = vld [vmem:[%s3 + $0x30] sm:$0xf]
  %v450 = vld [vmem:[%s3 + $0x34] sm:$0xf]
  %v451 = vld [vmem:[%s3 + $0x38] sm:$0xf]
  %v452 = vld [vmem:[%s3 + $0x3c] sm:$0xf]
  %v461 = vunpack.c.l.b16 %v429
  %v462 = vunpack.c.l.b16 %v430
  %v463 = vunpack.c.l.b16 %v431
  %v464 = vunpack.c.l.b16 %v432
  %v465 = vunpack.c.l.b16 %v433
  %v466 = vunpack.c.l.b16 %v434
  %v467 = vunpack.c.l.b16 %v435
  %v468 = vunpack.c.l.b16 %v436
  %vm469 = vcmask 1041409
  %v470 = vsel %vm469, %v462, %v461
  %vm471 = vcmask 1042434
  %v472 = vsel %vm471, %v463, %v470
  %vm473 = vcmask 1043459
  %v474 = vsel %vm473, %v464, %v472
  %vm475 = vcmask 1044484
  %v476 = vsel %vm475, %v465, %v474
  %vm477 = vcmask 1045509
  %v478 = vsel %vm477, %v466, %v476
  %vm479 = vcmask 1046534
  %v480 = vsel %vm479, %v467, %v478
  %vm481 = vcmask 1047559
  %v482 = vsel %vm481, %v468, %v480
  %v483 = vpack.c.b16 %v482, %v482
  %v501 = vunpack.c.l.b16 %v437
  %v502 = vunpack.c.l.b16 %v438
  %v503 = vunpack.c.l.b16 %v439
  %v504 = vunpack.c.l.b16 %v440
  %v505 = vunpack.c.l.b16 %v441
  %v506 = vunpack.c.l.b16 %v442
  %v507 = vunpack.c.l.b16 %v443
  %v508 = vunpack.c.l.b16 %v444
  %v509 = vunpack.c.l.b16 %v445
  %v510 = vunpack.c.l.b16 %v446
  %v511 = vunpack.c.l.b16 %v447
  %v512 = vunpack.c.l.b16 %v448
  %v513 = vunpack.c.l.b16 %v449
  %v514 = vunpack.c.l.b16 %v450
  %v515 = vunpack.c.l.b16 %v451
  %v516 = vunpack.c.l.b16 %v452
  %v517 = vpack.c.b16 %v502, %v501
  %v518 = vpack.c.b16 %v504, %v503
  %v519 = vpack.c.b16 %v506, %v505
  %v520 = vpack.c.b16 %v508, %v507
  %v521 = vpack.c.b16 %v510, %v509
  %v522 = vpack.c.b16 %v512, %v511
  %v523 = vpack.c.b16 %v514, %v513
  %v524 = vpack.c.b16 %v516, %v515
  %533 = vmatprep.subr.bf16.mxu0 0
  %534 = vmatpush1.bf16.msra.mxu0 %v524
  %535 = vmatprep.subr.bf16.mxu0 0
  %536 = vmatpush1.bf16.msra.mxu0 %v523
  %537 = vmatprep.subr.bf16.mxu0 0
  %538 = vmatpush1.bf16.msra.mxu0 %v522
  %539 = vmatprep.subr.bf16.mxu0 0
  %540 = vmatpush1.bf16.msra.mxu0 %v521
  %541 = vmatprep.subr.bf16.mxu0 0
  %542 = vmatpush1.bf16.msra.mxu0 %v520
  %543 = vmatprep.subr.bf16.mxu0 0
  %544 = vmatpush1.bf16.msra.mxu0 %v519
  %545 = vmatprep.subr.bf16.mxu0 0
  %546 = vmatpush1.bf16.msra.mxu0 %v518
  %547 = vmatprep.subr.bf16.mxu0 0
  %548 = vmatpush1.bf16.msra.mxu0 %v517
  %549 = vmatprep.subr.bf16.mxu0 0
  %550 = vmatpush2.bf16.msra.mxu0 0
  %551 = vmatprep.subr.bf16.mxu0 0
  %552 = vmatpush2.bf16.msra.mxu0 0
  %553 = vmatprep.subr.bf16.mxu0 0
  %554 = vmatpush2.bf16.msra.mxu0 0
  %555 = vmatprep.subr.bf16.mxu0 0
  %556 = vmatpush2.bf16.msra.mxu0 0
  %557 = vmatprep.subr.bf16.mxu0 0
  %558 = vmatpush2.bf16.msra.mxu0 0
  %559 = vmatprep.subr.bf16.mxu0 0
  %560 = vmatpush2.bf16.msra.mxu0 0
  %561 = vmatprep.subr.bf16.mxu0 0
  %562 = vmatpush2.bf16.msra.mxu0 0
  %563 = vmatprep.subr.bf16.mxu0 0
  %564 = vmatpush2.bf16.msra.mxu0 0
  %565 = vmatprep.mubr.bf16.mxu0 0
  %566 = vmatmul.mubr.bf16.gmra.mxu0 %v483
  %v567 = vpop.f32.mrf.mxu0
  %v568 = vadd.f32 0.0, %v567
  %v569 = vpop.f32.mrf.mxu0
  %v570 = vpop.f32.mrf.mxu0
  %v571 = vpop.f32.mrf.mxu0
  %572 = vdwg.mxu0
  %573 = vst [vmem:[%s4] sm:$0xff] %v568
  // Predicated region
  $region18: #{_lambda_.1} parent=0 // pred_check
    _
  $region19: #{_lambda_.1} parent=0 // pred_check_branch
    %575 = sbr.rel (0) target = $region21
  $region20: #{_lambda_.1} parent=0 // pred_region
    _
  $region21: #{_lambda_.1} parent=0 // pred_fallthru
    _
  // Predicated region
  $region22: #{_lambda_.1} parent=0 // pred_check
    _
  $region23: #{_lambda_.1} parent=0 // pred_check_branch
    %577 = sbr.rel (0) target = $region25
  $region24: #{_lambda_.1} parent=0 // pred_region
    _
  $region25: #{_lambda_.1} parent=0 // pred_fallthru
    _

</llo_original>
